<compile_context>
chip_gen: v6e
topology: v6e:2x2x1
jax: 0.10.0
libtpu: 0.0.40
codegen_flags: <defaults>
</compile_context>

<pallas_src>
import functools

import jax
import jax.numpy as jnp
from jax import lax
from jax.experimental import pallas as pl
from jax.experimental.pallas import tpu as pltpu


_LANE = 128


def _round_up(a, b):
    return ((a + b - 1) // b) * b


def _cdiv(a, b):
    return (a + b - 1) // b


def _parallel_conv_kernel(x_ref, halo_ref, w_ref, b_ref, o_ref, *,
                          seq_len, tile_l, ragged):
    # x_ref:    (1, Cin, TL)       input tile (channels on sublanes, length on lanes)
    # halo_ref: (B*nL, Cin, 2)     resident: [...,0]=column left of tile, [...,1]=right
    # w_ref:    (R, 3*Cin)         packed weights, R = 2*Cout_pad (resident)
    # b_ref:    (R, 1) float32     packed biases for both branches (resident)
    # o_ref:    (1, Cout, TL)
    b = pl.program_id(0)
    j = pl.program_id(1)
    n_l = pl.num_programs(1)

    x = x_ref[0]                                    # (Cin, TL), native dtype
    halo = halo_ref[b * n_l + j]                    # (Cin, 2)

    lane = lax.broadcasted_iota(jnp.int32, x.shape, 1)
    if ragged:
        # Zero lanes past the true sequence end: makes the ragged last tile exact
        # (x reads there are undefined; output stores past seq_len are dropped).
        x = jnp.where(j * tile_l + lane < seq_len, x, jnp.zeros_like(x))

    tl = x.shape[1]
    # Shifted views via lane rotation (XLU) + single-column halo fixup.
    x_prev = jnp.where(lane == 0, halo[:, 0:1], pltpu.roll(x, shift=1, axis=1))
    x_next = jnp.where(lane == tl - 1, halo[:, 1:2], pltpu.roll(x, shift=tl - 1, axis=1))

    # One fused MXU matmul over K = 3*Cin computes both branches at once:
    # rows [0:Cout_pad] accumulate the k=3 branch, rows [Cout_pad:2*Cout_pad] the k=1
    # branch (its weights live only in the centre-tap columns).  f32 accumulation.
    xk = jnp.concatenate([x_prev, x, x_next], axis=0)               # (3*Cin, TL)
    y = jnp.dot(w_ref[...], xk, preferred_element_type=jnp.float32) + b_ref[...]

    half = y.shape[0] // 2
    res = jnp.maximum(y[:half], 0.0) + jnp.maximum(y[half:], 0.0)   # (Cout_pad, TL) f32
    o_ref[0] = res[: o_ref.shape[1]].astype(o_ref.dtype)


def _vmem_limit_bytes():
    """Scoped-VMEM limit per generation, with headroom under physical capacity."""
    try:
        cap = pltpu.get_tpu_info().vmem_capacity_bytes   # v5e/v6e 128 MiB, v7x 64 MiB
    except Exception:
        cap = 64 * 1024 * 1024                           # assume smallest (v7x)
    return int(min(cap - 16 * 1024 * 1024, 96 * 1024 * 1024))


def _default_tile_l(cin, cout, cout_pad, itemsize, vmem_limit):
    """Largest lane-multiple L-tile that fits the VMEM limit we set."""
    # Bytes per length column: double-buffered x/out pipeline blocks (native dtype)
    # + in-kernel intermediates (x, x_prev, x_next, xk native; y, relu/res f32).
    per_col = (2 * (cin + cout) * itemsize
               + 6 * cin * max(itemsize, 4)
               + 5 * cout_pad * 4)
    budget = (vmem_limit * 3) // 4
    tl = (budget // max(per_col, 1)) // _LANE * _LANE
    return int(min(max(tl, _LANE), 64 * 1024))


def parallel_conv(x_ncl, w_conv1, b_conv1, w_conv2, b_conv2, *, tile_l=None):
    """ParallelConv forward.  x_ncl: (B, Cin, L) (PyTorch NCL).  Returns (B, Cout, L)."""
    B, Cin, L = x_ncl.shape
    Cout = w_conv1.shape[0]
    dt = x_ncl.dtype
    itemsize = jnp.dtype(dt).itemsize

    cout_pad = _round_up(Cout, 8)
    R = 2 * cout_pad

    vmem_limit = _vmem_limit_bytes()

    # ---- length tiling: lane-dense (multiple-of-128) blocks, no x pad / out slice ----
    if tile_l is None:
        tile_l = _default_tile_l(Cin, Cout, cout_pad, itemsize, vmem_limit)
    TL = min(max(_LANE, _round_up(int(tile_l), _LANE)), _round_up(L, _LANE))
    nL = _cdiv(L, TL)
    if B * nL < 2 and L > _LANE:
        # Keep both v7x TensorCores busy even at B=1.
        TL = _round_up(_cdiv(L, 2), _LANE)
        nL = _cdiv(L, TL)
    ragged = (L % TL) != 0

    # ---- pack weights / bias once, wrapper-side (no per-step in-kernel casts) ----
    wp = jnp.zeros((R, 3 * Cin), jnp.float32)
    wp = wp.at[:Cout, 0:Cin].set(w_conv1[:, :, 0].astype(jnp.float32))         # tap x[l-1]
    wp = wp.at[:Cout, Cin:2 * Cin].set(w_conv1[:, :, 1].astype(jnp.float32))   # tap x[l]
    wp = wp.at[:Cout, 2 * Cin:].set(w_conv1[:, :, 2].astype(jnp.float32))      # tap x[l+1]
    wp = wp.at[cout_pad:cout_pad + Cout, Cin:2 * Cin].set(
        w_conv2[:, :, 0].astype(jnp.float32))                                  # k=1 branch
    wp = wp.astype(dt)                                    # MXU gets the native dtype

    bias = jnp.zeros((R, 1), jnp.float32)
    bias = bias.at[:Cout, 0].set(b_conv1.astype(jnp.float32))
    bias = bias.at[cout_pad:cout_pad + Cout, 0].set(b_conv2.astype(jnp.float32))

    # ---- per-tile halo columns (B*nL, Cin, 2): tiny, resident for the whole grid ----
    # [...,0] = x[:, j*TL-1] (zero for j=0), [...,1] = x[:, (j+1)*TL] (zero for j=nL-1),
    # so cross-tile 'same' padding is exact without ever re-fetching neighbour tiles.
    zcol = jnp.zeros((B, Cin, 1), dt)
    if nL > 1:
        lefts = jnp.concatenate([zcol, x_ncl[:, :, TL - 1:(nL - 1) * TL:TL]], axis=2)
        rights = jnp.concatenate([x_ncl[:, :, TL:(nL - 1) * TL + 1:TL], zcol], axis=2)
    else:
        lefts, rights = zcol, zcol
    halo = jnp.transpose(jnp.stack([lefts, rights], axis=-1), (0, 2, 1, 3))
    halo = halo.reshape(B * nL, Cin, 2)

    kernel = functools.partial(_parallel_conv_kernel,
                               seq_len=L, tile_l=TL, ragged=ragged)

    out = pl.pallas_call(
        kernel,
        out_shape=jax.ShapeDtypeStruct((B, Cout, L), dt),
        grid_spec=pltpu.PrefetchScalarGridSpec(
            num_scalar_prefetch=0,
            grid=(B, nL),
            in_specs=[
                pl.BlockSpec((1, Cin, TL), lambda b, j: (b, 0, j)),
                pl.BlockSpec((B * nL, Cin, 2), lambda b, j: (0, 0, 0)),  # resident halo
                pl.BlockSpec((R, 3 * Cin), lambda b, j: (0, 0)),         # resident weights
                pl.BlockSpec((R, 1), lambda b, j: (0, 0)),               # resident bias
            ],
            out_specs=pl.BlockSpec((1, Cout, TL), lambda b, j: (b, 0, j)),
        ),
        compiler_params=pltpu.CompilerParams(
            dimension_semantics=("parallel", "parallel"),
            vmem_limit_bytes=vmem_limit,
        ),
    )(x_ncl, halo, wp, bias)

    return out


def _reference(x_ncl, w_conv1, b_conv1, w_conv2, b_conv2):
    dn = ("NCH", "OIH", "NCH")
    y1 = jax.lax.conv_general_dilated(x_ncl, w_conv1, (1,), "SAME",
                                      dimension_numbers=dn) + b_conv1[None, :, None]
    y2 = jax.lax.conv_general_dilated(x_ncl, w_conv2, (1,), "SAME",
                                      dimension_numbers=dn) + b_conv2[None, :, None]
    return jnp.maximum(y1, 0.0) + jnp.maximum(y2, 0.0)


if __name__ == "__main__":
    key = jax.random.PRNGKey(0)
    kx, kw1, kb1, kw2, kb2, kx2 = jax.random.split(key, 6)

    # Shapes implied by the module: Conv1d(in_channels=4, out_channels=8), batch=2, L=16.
    B, Cin, Cout, L = 2, 4, 8, 16
    x = jax.random.normal(kx, (B, Cin, L), dtype=jnp.float32)
    w_conv1 = jax.random.normal(kw1, (Cout, Cin, 3), dtype=jnp.float32) * 0.2
    b_conv1 = jax.random.normal(kb1, (Cout,), dtype=jnp.float32) * 0.1
    w_conv2 = jax.random.normal(kw2, (Cout, Cin, 1), dtype=jnp.float32) * 0.2
    b_conv2 = jax.random.normal(kb2, (Cout,), dtype=jnp.float32) * 0.1

    out = jax.block_until_ready(parallel_conv(x, w_conv1, b_conv1, w_conv2, b_conv2))
    ref = _reference(x, w_conv1, b_conv1, w_conv2, b_conv2)
    assert out.shape == (B, Cout, L)
    assert jnp.allclose(out, ref, atol=1e-4, rtol=1e-4), "mismatch vs reference (single tile)"

    # Longer, non-multiple-of-128 sequence with a forced small tile: exercises the
    # multi-tile halo path plus the in-kernel ragged-tail masking (no pad / no slice).
    L2 = 200
    x2 = jax.random.normal(kx2, (B, Cin, L2), dtype=jnp.float32)
    out2 = jax.block_until_ready(
        parallel_conv(x2, w_conv1, b_conv1, w_conv2, b_conv2, tile_l=128))
    ref2 = _reference(x2, w_conv1, b_conv1, w_conv2, b_conv2)
    assert out2.shape == (B, Cout, L2)
    assert jnp.allclose(out2, ref2, atol=1e-4, rtol=1e-4), "mismatch vs reference (tiled L)"

    print("KERNEL_OK")
</pallas_src>

<mosaic_0001>
module attributes {stable_mosaic.version = 11 : i64} {
  func.func @_parallel_conv_kernel(%arg0: i32, %arg1: i32, %arg2: memref<1x4x128xf32, #tpu.memory_space<vmem>>, %arg3: memref<2x4x2xf32, #tpu.memory_space<vmem>>, %arg4: memref<16x12xf32, #tpu.memory_space<vmem>>, %arg5: memref<16x1xf32, #tpu.memory_space<vmem>>, %arg6: memref<1x8x128xf32, #tpu.memory_space<vmem>>) attributes {dimension_semantics = [#tpu.dimension_semantics<parallel>, #tpu.dimension_semantics<parallel>], iteration_bounds = array<i64: 2, 1>, scalar_prefetch = 0 : i64, scratch_operands = 0 : i64, tpu.core_type = #tpu.core_type<tc>, window_params = [{transform_indices = @transform_0, window_bounds = array<i64: 1, 4, 128>}, {pipeline_mode = #tpu.pipeline_mode<synchronous>, transform_indices = @transform_1, window_bounds = array<i64: 2, 4, 2>}, {pipeline_mode = #tpu.pipeline_mode<synchronous>, transform_indices = @transform_2, window_bounds = array<i64: 16, 12>}, {pipeline_mode = #tpu.pipeline_mode<synchronous>, transform_indices = @transform_3, window_bounds = array<i64: 16, 1>}, {transform_indices = @transform_4, window_bounds = array<i64: 1, 8, 128>}]} {
    %c0 = arith.constant 0 : index
    %c0_0 = arith.constant 0 : index
    %c0_1 = arith.constant 0 : index
    %0 = vector.load %arg2[%c0, %c0_0, %c0_1] : memref<1x4x128xf32, #tpu.memory_space<vmem>>, vector<1x4x128xf32>
    %1 = vector.shape_cast %0 : vector<1x4x128xf32> to vector<4x128xf32>
    %c1_i32 = arith.constant 1 : i32
    %2 = arith.muli %arg0, %c1_i32 : i32
    %3 = arith.addi %2, %arg1 : i32
    %4 = arith.index_cast %3 : i32 to index
    %c0_2 = arith.constant 0 : index
    %c0_3 = arith.constant 0 : index
    %5 = vector.load %arg3[%4, %c0_2, %c0_3] : memref<2x4x2xf32, #tpu.memory_space<vmem>>, vector<1x4x2xf32>
    %6 = vector.shape_cast %5 : vector<1x4x2xf32> to vector<4x2xf32>
    %7 = tpu.iota {dimensions = array<i32: 1>} : vector<4x128xi32>
    %c128_i32 = arith.constant 128 : i32
    %8 = arith.muli %arg1, %c128_i32 : i32
    %9 = vector.broadcast %8 : i32 to vector<4x128xi32>
    %10 = arith.addi %9, %7 : vector<4x128xi32>
    %c16_i32 = arith.constant 16 : i32
    %11 = vector.broadcast %c16_i32 : i32 to vector<4x128xi32>
    %12 = arith.cmpi slt, %10, %11 : vector<4x128xi32>
    %cst = arith.constant 0.000000e+00 : f32
    %13 = vector.broadcast %cst : f32 to vector<4x128xf32>
    %14 = arith.select %12, %1, %13 : vector<4x128xi1>, vector<4x128xf32>
    %c0_i32 = arith.constant 0 : i32
    %15 = vector.broadcast %c0_i32 : i32 to vector<4x128xi32>
    %16 = arith.cmpi eq, %7, %15 : vector<4x128xi32>
    %17 = vector.extract_strided_slice %6 {offsets = [0, 0], sizes = [4, 1], strides = [1, 1]} : vector<4x2xf32> to vector<4x1xf32>
    %c1_i32_4 = arith.constant 1 : i32
    %18 = tpu.dynamic_rotate %14 by %c1_i32_4 dim 1 : vector<4x128xf32>, i32 -> vector<4x128xf32>
    %19 = vector.shape_cast %17 : vector<4x1xf32> to vector<4x1xf32>
    %20 = vector.broadcast %19 : vector<4x1xf32> to vector<4x128xf32>
    %21 = arith.select %16, %20, %18 : vector<4x128xi1>, vector<4x128xf32>
    %c127_i32 = arith.constant 127 : i32
    %22 = vector.broadcast %c127_i32 : i32 to vector<4x128xi32>
    %23 = arith.cmpi eq, %7, %22 : vector<4x128xi32>
    %24 = vector.extract_strided_slice %6 {offsets = [0, 1], sizes = [4, 1], strides = [1, 1]} : vector<4x2xf32> to vector<4x1xf32>
    %c127_i32_5 = arith.constant 127 : i32
    %25 = tpu.dynamic_rotate %14 by %c127_i32_5 dim 1 : vector<4x128xf32>, i32 -> vector<4x128xf32>
    %26 = vector.shape_cast %24 : vector<4x1xf32> to vector<4x1xf32>
    %27 = vector.broadcast %26 : vector<4x1xf32> to vector<4x128xf32>
    %28 = arith.select %23, %27, %25 : vector<4x128xi1>, vector<4x128xf32>
    %29 = tpu.concatenate %21, %14, %28 in 0 : vector<4x128xf32>, vector<4x128xf32>, vector<4x128xf32> -> vector<12x128xf32>
    %c0_6 = arith.constant 0 : index
    %c0_7 = arith.constant 0 : index
    %30 = vector.load %arg4[%c0_6, %c0_7] : memref<16x12xf32, #tpu.memory_space<vmem>>, vector<16x12xf32>
    %cst_8 = arith.constant dense<0.000000e+00> : vector<16x128xf32>
    %31 = tpu.matmul %30, %29, %cst_8 {dimension_numbers = #tpu.dot_dimension_numbers<[1], [0], [0], [1], [0, 0, 1, 1], [], []>} : vector<16x12xf32>, vector<12x128xf32>, vector<16x128xf32> -> vector<16x128xf32>
    %c0_9 = arith.constant 0 : index
    %c0_10 = arith.constant 0 : index
    %32 = vector.load %arg5[%c0_9, %c0_10] : memref<16x1xf32, #tpu.memory_space<vmem>>, vector<16x1xf32>
    %33 = vector.broadcast %32 : vector<16x1xf32> to vector<16x128xf32>
    %34 = arith.addf %31, %33 : vector<16x128xf32>
    %35 = vector.extract_strided_slice %34 {offsets = [0, 0], sizes = [8, 128], strides = [1, 1]} : vector<16x128xf32> to vector<8x128xf32>
    %cst_11 = arith.constant 0.000000e+00 : f32
    %36 = vector.broadcast %cst_11 : f32 to vector<8x128xf32>
    %37 = arith.maximumf %35, %36 : vector<8x128xf32>
    %38 = vector.extract_strided_slice %34 {offsets = [8, 0], sizes = [8, 128], strides = [1, 1]} : vector<16x128xf32> to vector<8x128xf32>
    %cst_12 = arith.constant 0.000000e+00 : f32
    %39 = vector.broadcast %cst_12 : f32 to vector<8x128xf32>
    %40 = arith.maximumf %38, %39 : vector<8x128xf32>
    %41 = arith.addf %37, %40 : vector<8x128xf32>
    %c0_13 = arith.constant 0 : index
    %c0_14 = arith.constant 0 : index
    %c0_15 = arith.constant 0 : index
    %42 = vector.load %arg6[%c0_13, %c0_14, %c0_15] : memref<1x8x128xf32, #tpu.memory_space<vmem>>, vector<1x8x128xf32>
    %43 = vector.shape_cast %42 : vector<1x8x128xf32> to vector<8x128xf32>
    %44 = vector.shape_cast %41 : vector<8x128xf32> to vector<1x8x128xf32>
    tpu.vector_store %arg6[%c0_13, %c0_14, %c0_15], %44 {strides = array<i32>} : memref<1x8x128xf32, #tpu.memory_space<vmem>>, vector<1x8x128xf32>,
    return
  }
  func.func @transform_0(%arg0: i32, %arg1: i32) -> (i32, i32, i32) {
    %c0_i32 = arith.constant 0 : i32
    %c0_i32_0 = arith.constant 0 : i32
    return %arg0, %c0_i32, %arg1 : i32, i32, i32
  }
  func.func @transform_1(%arg0: i32, %arg1: i32) -> (i32, i32, i32) {
    %c0_i32 = arith.constant 0 : i32
    %c0_i32_0 = arith.constant 0 : i32
    %c0_i32_1 = arith.constant 0 : i32
    %c0_i32_2 = arith.constant 0 : i32
    return %c0_i32, %c0_i32_0, %c0_i32_1 : i32, i32, i32
  }
  func.func @transform_2(%arg0: i32, %arg1: i32) -> (i32, i32) {
    %c0_i32 = arith.constant 0 : i32
    %c0_i32_0 = arith.constant 0 : i32
    %c0_i32_1 = arith.constant 0 : i32
    return %c0_i32, %c0_i32_0 : i32, i32
  }
  func.func @transform_3(%arg0: i32, %arg1: i32) -> (i32, i32) {
    %c0_i32 = arith.constant 0 : i32
    %c0_i32_0 = arith.constant 0 : i32
    %c0_i32_1 = arith.constant 0 : i32
    return %c0_i32, %c0_i32_0 : i32, i32
  }
  func.func @transform_4(%arg0: i32, %arg1: i32) -> (i32, i32, i32) {
    %c0_i32 = arith.constant 0 : i32
    %c0_i32_0 = arith.constant 0 : i32
    return %arg0, %c0_i32, %arg1 : i32, i32, i32
  }
}

</mosaic_0001>

<llo_original>
// kernel: tpu_custom_call.1
$region0: #{tpu_custom_call.1}
  #allocation0 [shape = 'u32[]', space=smem, size = 0x4, offset = 0x4, fixed_abs, tag = 'smem constant byte address 0x4 - core index']
  #allocation1 [shape = 'u32[144,128]{1,0:T(1,128)}', space=vmem, size = 0x12000, scoped, tag = 'internal scratch']
  %s0 = inlined_call_operand.vmem [shape: f32[2,4,16], index: 0, kind: input, shape index: {}]
  %s1 = inlined_call_operand.vmem [shape: f32[2,4,2], index: 1, kind: input, shape index: {}]
  %s2 = inlined_call_operand.vmem [shape: f32[16,12], index: 2, kind: input, shape index: {}]
  %s3 = inlined_call_operand.vmem [shape: f32[16,1], index: 3, kind: input, shape index: {}]
  %s4 = inlined_call_operand.hbm [shape: f32[2,8,16], index: 4, kind: output, shape index: {}]
  %s5 = sld [smem:[#allocation0]]
  $region49: #{tpu_custom_call.1} parent=0
    _
  %s7 = ssub.s32 1, %s5
  %s8 = scalar_select 0, %s7, %s5
  $region1: #{tpu_custom_call.1} parent=0
    #allocation2 [shape = 'u8[8192]{0}', space=vmem, size = 0x2000, scoped, tag = 'output window, operand 0']
    #allocation3 [shape = 's32[2]{0}', space=sflag, size = 0x8, scoped, tag = 'scoped memory for tpu_custom_call.1']
    %9 = vsyncpa [#allocation3], 0
    %s10 = scalar_lea.sflag [#allocation3], 1
    %11 = vsyncpa %s10, 0
    loop: start=0, step=1, limit=4
    $region2: #{tpu_custom_call.1} parent=1 // loop_pre_header
      _
    $region3: #{tpu_custom_call.1} parent=1 // loop_header
      %s13 = sphi 0, %s17
      %p14 = scmp.ge.s32.totalorder %s13, 4
      %s20 = sphi 0, %s32
      %s21 = sphi 0, %s28
      %s22 = sphi 0, %s20
      %s23 = sphi 0, %s21
      %s24 = sphi 0, %s22
      %s25 = sphi 0, %s23
      %s37 = sphi 0, %s39
      %s40 = sphi 0, %s37
      %s41 = sphi 0, %s40
      %s57 = sphi 0, %s41
      %s61 = sphi 0, %s61
      %s63 = sphi 0, %s61
      %s64 = sphi 0, %s63
      %s78 = sphi 0, %s64
      %s82 = sphi 0, %s82
      %s84 = sphi 0, %s82
      %s85 = sphi 0, %s84
      %s99 = sphi 0, %s85
      %s103 = sphi 0, %s103
      %s105 = sphi 0, %s103
      %s106 = sphi 0, %s105
      %s120 = sphi 0, %s106
      %s128 = sphi 0, %s130
      %s131 = sphi 0, %s128
      %s132 = sphi 0, %s131
      %s148 = sphi 0, %s132
    $region4: #{tpu_custom_call.1} parent=1 // loop_header_branch
      %16 = sbr.rel (%p14) target = $region8
    $region5: #{tpu_custom_call.1} parent=1 // loop_body
      %s18 = ssub.s32 %s13, 1
      %s19 = ssub.s32 %s13, 2
      %s26 = sadd.s32 1, %s21
      %p27 = scmp.ge.s32.totalorder %s26, 1
      %s28 = scalar_select %p27, 0, %s26
      %s29 = sadd.s32 1, %s20
      %s30 = scalar_select %p27, %s29, %s20
      %p31 = scmp.ge.s32.totalorder %s30, 2
      %s32 = scalar_select %p31, 0, %s30
      %s33 = ssub.s32 %s20, %s32
      %s34 = ssub.s32 %s21, %s28
      %s35 = sor.u32 %s33, %s34
      %p36 = scmp.eq.s32.totalorder %s35, 0
      %s38 = sadd.s32 %s37, 1
      %s39 = scalar_select %p36, %s37, %s38
      %p42 = pneg %p36
      %p43 = scmp.eq.s32.totalorder %s13, 1
      %p44 = por %p42, %p43
      %p45 = scmp.ne.s32.totalorder %s37, %s40
      %p46 = scmp.eq.s32.totalorder %s13, 0
      %p47 = por %p45, %p46
      %p48 = scmp.ne.s32.totalorder %s37, %s40
      %p49 = scmp.eq.s32.totalorder %s18, 1
      %p50 = por %p48, %p49
      %p51 = scmp.ne.s32.totalorder %s40, %s41
      %p52 = scmp.eq.s32.totalorder %s18, 0
      %p53 = por %p51, %p52
      %p54 = scmp.ne.s32.totalorder %s40, %s41
      %p55 = scmp.eq.s32.totalorder %s19, 1
      %p56 = por %p54, %p55
      %p58 = scmp.ne.s32.totalorder %s41, %s57
      %p59 = scmp.eq.s32.totalorder %s19, 0
      %p60 = por %p58, %p59
      %s62 = sadd.s32 %s61, 1
      %p65 = scmp.eq.s32.totalorder %s13, 1
      %p66 = scmp.ne.s32.totalorder %s61, %s63
      %p67 = scmp.eq.s32.totalorder %s13, 0
      %p68 = por %p66, %p67
      %p69 = scmp.ne.s32.totalorder %s61, %s63
      %p70 = scmp.eq.s32.totalorder %s18, 1
      %p71 = por %p69, %p70
      %p72 = scmp.ne.s32.totalorder %s63, %s64
      %p73 = scmp.eq.s32.totalorder %s18, 0
      %p74 = por %p72, %p73
      %p75 = scmp.ne.s32.totalorder %s63, %s64
      %p76 = scmp.eq.s32.totalorder %s19, 1
      %p77 = por %p75, %p76
      %p79 = scmp.ne.s32.totalorder %s64, %s78
      %p80 = scmp.eq.s32.totalorder %s19, 0
      %p81 = por %p79, %p80
      %s83 = sadd.s32 %s82, 1
      %p86 = scmp.eq.s32.totalorder %s13, 1
      %p87 = scmp.ne.s32.totalorder %s82, %s84
      %p88 = scmp.eq.s32.totalorder %s13, 0
      %p89 = por %p87, %p88
      %p90 = scmp.ne.s32.totalorder %s82, %s84
      %p91 = scmp.eq.s32.totalorder %s18, 1
      %p92 = por %p90, %p91
      %p93 = scmp.ne.s32.totalorder %s84, %s85
      %p94 = scmp.eq.s32.totalorder %s18, 0
      %p95 = por %p93, %p94
      %p96 = scmp.ne.s32.totalorder %s84, %s85
      %p97 = scmp.eq.s32.totalorder %s19, 1
      %p98 = por %p96, %p97
      %p100 = scmp.ne.s32.totalorder %s85, %s99
      %p101 = scmp.eq.s32.totalorder %s19, 0
      %p102 = por %p100, %p101
      %s104 = sadd.s32 %s103, 1
      %p107 = scmp.eq.s32.totalorder %s13, 1
      %p108 = scmp.ne.s32.totalorder %s103, %s105
      %p109 = scmp.eq.s32.totalorder %s13, 0
      %p110 = por %p108, %p109
      %p111 = scmp.ne.s32.totalorder %s103, %s105
      %p112 = scmp.eq.s32.totalorder %s18, 1
      %p113 = por %p111, %p112
      %p114 = scmp.ne.s32.totalorder %s105, %s106
      %p115 = scmp.eq.s32.totalorder %s18, 0
      %p116 = por %p114, %p115
      %p117 = scmp.ne.s32.totalorder %s105, %s106
      %p118 = scmp.eq.s32.totalorder %s19, 1
      %p119 = por %p117, %p118
      %p121 = scmp.ne.s32.totalorder %s106, %s120
      %p122 = scmp.eq.s32.totalorder %s19, 0
      %p123 = por %p121, %p122
      %s124 = ssub.s32 %s20, %s32
      %s125 = ssub.s32 %s21, %s28
      %s126 = sor.u32 %s124, %s125
      %p127 = scmp.eq.s32.totalorder %s126, 0
      %s129 = sadd.s32 %s128, 1
      %s130 = scalar_select %p127, %s128, %s129
      %p133 = pneg %p127
      %p134 = scmp.eq.s32.totalorder %s13, 1
      %p135 = por %p133, %p134
      %p136 = scmp.ne.s32.totalorder %s128, %s131
      %p137 = scmp.eq.s32.totalorder %s13, 0
      %p138 = por %p136, %p137
      %p139 = scmp.ne.s32.totalorder %s128, %s131
      %p140 = scmp.eq.s32.totalorder %s18, 1
      %p141 = por %p139, %p140
      %p142 = scmp.ne.s32.totalorder %s131, %s132
      %p143 = scmp.eq.s32.totalorder %s18, 0
      %p144 = por %p142, %p143
      %p145 = scmp.ne.s32.totalorder %s131, %s132
      %p146 = scmp.eq.s32.totalorder %s19, 1
      %p147 = por %p145, %p146
      %p149 = scmp.ne.s32.totalorder %s132, %s148
      %p150 = scmp.eq.s32.totalorder %s19, 0
      %p151 = por %p149, %p150
      %p152 = scmp.le.s32.totalorder 1, %s13
      %p153 = scmp.lt.s32.totalorder %s13, 3
      %p154 = pnand %p152, %p153
      %p155 = pneg %p154
      // Predicated region
      $region9: #{tpu_custom_call.1} parent=5 // pred_check
        _
      $region10: #{tpu_custom_call.1} parent=5 // pred_check_branch
        %157 = sbr.rel (%p154) target = $region12
      $region11: #{tpu_custom_call.1} parent=5 // pred_region
        %s158 = ssub.s32 %s13, 1
        // Predicated region
        $region13: #{tpu_custom_call.1} parent=11 // pred_check
          %p159 = pneg %p74
        $region14: #{tpu_custom_call.1} parent=11 // pred_check_branch
          %161 = sbr.rel (%p159) target = $region16
        $region15: #{tpu_custom_call.1} parent=11 // pred_region
          _
        $region16: #{tpu_custom_call.1} parent=11 // pred_fallthru
          _
        // Predicated region
        $region17: #{tpu_custom_call.1} parent=11 // pred_check
          %p162 = pneg %p95
        $region18: #{tpu_custom_call.1} parent=11 // pred_check_branch
          %164 = sbr.rel (%p162) target = $region20
        $region19: #{tpu_custom_call.1} parent=11 // pred_region
          _
        $region20: #{tpu_custom_call.1} parent=11 // pred_fallthru
          _
        // Predicated region
        $region21: #{tpu_custom_call.1} parent=11 // pred_check
          %p165 = pneg %p116
        $region22: #{tpu_custom_call.1} parent=11 // pred_check_branch
          %167 = sbr.rel (%p165) target = $region24
        $region23: #{tpu_custom_call.1} parent=11 // pred_region
          _
        $region24: #{tpu_custom_call.1} parent=11 // pred_fallthru
          _
      $region12: #{tpu_custom_call.1} parent=5 // pred_fallthru
        _
      %p168 = scmp.lt.s32.totalorder %s13, 2
      // Predicated region
      $region25: #{tpu_custom_call.1} parent=5 // pred_check
        %p169 = pneg %p168
      $region26: #{tpu_custom_call.1} parent=5 // pred_check_branch
        %171 = sbr.rel (%p169) target = $region28
      $region27: #{tpu_custom_call.1} parent=5 // pred_region
        // Predicated region
        $region29: #{tpu_custom_call.1} parent=27 // pred_check
          %p172 = pneg %p47
        $region30: #{tpu_custom_call.1} parent=27 // pred_check_branch
          %174 = sbr.rel (%p172) target = $region32
        $region31: #{tpu_custom_call.1} parent=27 // pred_region
          %p175 = scmp.lt.s32.totalorder %s20, 1
          %s176 = scalar_select %p175, %s20, 1
          %p177 = scmp.lt.s32.totalorder %s21, 0
          %s178 = scalar_select %p177, %s21, 0
          %s179 = sadd.s32 %s178, %s176
          %s180 = smul.addr %s179, 4
          %s181 = scalar_lea.vmem %s0, %s180
        $region32: #{tpu_custom_call.1} parent=27 // pred_fallthru
          _
      $region28: #{tpu_custom_call.1} parent=5 // pred_fallthru
        _
      %p182 = scmp.le.s32.totalorder 1, %s13
      %p183 = scmp.lt.s32.totalorder %s13, 3
      %p184 = pnand %p182, %p183
      %p185 = pneg %p184
      // Predicated region
      $region33: #{tpu_custom_call.1} parent=5 // pred_check
        _
      $region34: #{tpu_custom_call.1} parent=5 // pred_check_branch
        %187 = sbr.rel (%p184) target = $region36
      $region35: #{tpu_custom_call.1} parent=5 // pred_region
        %s188 = ssub.s32 %s13, 1
        %p189 = scmp.lt.s32.totalorder %s22, 1
        %s190 = scalar_select %p189, %s22, 1
        %p191 = scmp.lt.s32.totalorder %s23, 0
        %s192 = scalar_select %p191, %s23, 0
        %s193 = sadd.s32 %s192, %s190
        %s194 = smul.addr %s193, 4
        %s195 = scalar_lea.vmem %s0, %s194
        %p196 = pneg %p53
        %p197 = pneg %p50
        %p198 = pneg %p74
        %p199 = pneg %p71
        %p200 = pneg %p95
        %p201 = pneg %p92
        %p202 = pneg %p116
        %p203 = pneg %p113
        %p204 = pneg %p144
        %p205 = pneg %p141
        %s206 = sand.u32 %s131, 1
        %s207 = scalar_lea.sflag [#allocation3], %s206
        %s208 = sand.u32 %s131, 1
        %s209 = smul.addr %s208, 8
        %s210 = scalar_lea.vmem [#allocation2], %s209
        %p211 = scmp.lt.s32.totalorder %s22, 1
        %s212 = scalar_select %p211, %s22, 1
        %p213 = scmp.lt.s32.totalorder %s23, 0
        %s214 = scalar_select %p213, %s23, 0
        %s215 = sadd.s32 %s214, %s212
        %s216 = smul.addr %s215, 4
        %s217 = scalar_lea.vmem %s0, %s216
        %v218 = vld [vmem:[%s217] sm:$0xf]
        %s219 = sadd.s32 %s22, %s23
        %s220 = smul.u32 %s219, 4
        %s221 = scalar_lea.vmem %s1, %s220
        %v222 = vld [vmem:[%s221] sm:$0xf]
        %v223 = vlaneseq
        %v224 = vand.u32 %v223, 127
        %s225 = smul.u32 %s23, 128
        %v226 = vstv %s225
        %v227 = vadd.s32 %v226, %v224
        %vm228 = vcmp.lt.s32.totalorder %v227, 16
        %v229 = vsel %vm228, %v218, 0.0
        %vm230 = vcmp.eq.s32.totalorder %v224, 0
        %231 = vrot.lane.b32.xlu0 %v229, 1
        %v232 = vpop.permute.xlu0 %231
        %234 = vset.pattern.permute.xlu0 0
        %235 = vperm.xlu0 %234, %v222
        %v236 = vpop.permute.xlu0 %235
        %v238 = vsel %vm230, %v236, %v232
        %vm239 = vcmp.eq.s32.totalorder %v224, 127
        %240 = vrot.lane.b32.xlu0 %v229, 127
        %v241 = vpop.permute.xlu0 %240
        %242 = vset.pattern.permute.xlu0 1
        %243 = vperm.xlu0 %242, %v222
        %v244 = vpop.permute.xlu0 %243
        %v246 = vsel %vm239, %v244, %v241
        %v248 = vrot.slane %v229, 4
        %vm250 = vcmask 1043456
        %v251 = vsel %vm250, %v238, %v248
        %v252 = vld [vmem:[%s2] sm:$0xff]
        %v253 = vld [vmem:[%s2 + $0x8] sm:$0xff]
        %v254 = vld [vmem:[%s3] sm:$0xff]
        %v255 = vld [vmem:[%s3 + $0x8] sm:$0xff]
        %257 = vset.pattern.permute.xlu0 0
        %258 = vperm.xlu0 %257, %v254
        %v259 = vpop.permute.xlu0 %258
        %262 = vset.pattern.permute.xlu0 0
        %263 = vperm.xlu0 %262, %v255
        %v264 = vpop.permute.xlu0 %263
        %vm266 = vcmask 97280
        %v268 = vsel %vm266, %v252, 0
        %v271 = vsel %vm266, %v253, 0
        %v274 = vsel %vm250, %v246, 0
        %276 = vmatprep.subr.mxu0 0.0
        %277 = vmatpush1.msra.mxu0 0.0
        %278 = vmatprep.subr.mxu0 0.0
        %279 = vmatpush1.msra.mxu0 0.0
        %280 = vmatprep.subr.mxu0 0.0
        %281 = vmatpush1.msra.mxu0 0.0
        %282 = vmatprep.subr.mxu0 0.0
        %283 = vmatpush1.msra.mxu0 0.0
        %284 = vmatprep.subr.mxu0 0.0
        %285 = vmatpush1.msra.mxu0 0.0
        %286 = vmatprep.subr.mxu0 0.0
        %287 = vmatpush1.msra.mxu0 0.0
        %288 = vmatprep.subr.mxu0 0.0
        %289 = vmatpush1.msra.mxu0 0.0
        %290 = vmatprep.subr.mxu0 0.0
        %291 = vmatpush1.msra.mxu0 0.0
        %292 = vmatprep.subr.mxu0 0.0
        %293 = vmatpush1.msra.mxu0 0.0
        %294 = vmatprep.subr.mxu0 0.0
        %295 = vmatpush1.msra.mxu0 0.0
        %296 = vmatprep.subr.mxu0 0.0
        %297 = vmatpush1.msra.mxu0 0.0
        %298 = vmatprep.subr.mxu0 0.0
        %299 = vmatpush1.msra.mxu0 0.0
        %300 = vmatprep.subr.mxu0 0.0
        %301 = vmatpush1.msra.mxu0 0.0
        %302 = vmatprep.subr.mxu0 0.0
        %303 = vmatpush1.msra.mxu0 0.0
        %304 = vmatprep.subr.mxu0 0.0
        %305 = vmatpush1.msra.mxu0 %v274
        %306 = vmatprep.subr.mxu0 0.0
        %307 = vmatpush1.msra.mxu0 %v251
        %308 = vmatprep.subr.mxu0 0.0
        %309 = vmatpush2.msra.mxu0 0.0
        %310 = vmatprep.subr.mxu0 0.0
        %311 = vmatpush2.msra.mxu0 0.0
        %312 = vmatprep.subr.mxu0 0.0
        %313 = vmatpush2.msra.mxu0 0.0
        %314 = vmatprep.subr.mxu0 0.0
        %315 = vmatpush2.msra.mxu0 0.0
        %316 = vmatprep.subr.mxu0 0.0
        %317 = vmatpush2.msra.mxu0 0.0
        %318 = vmatprep.subr.mxu0 0.0
        %319 = vmatpush2.msra.mxu0 0.0
        %320 = vmatprep.subr.mxu0 0.0
        %321 = vmatpush2.msra.mxu0 0.0
        %322 = vmatprep.subr.mxu0 0.0
        %323 = vmatpush2.msra.mxu0 0.0
        %324 = vmatprep.subr.mxu0 0.0
        %325 = vmatpush2.msra.mxu0 0.0
        %326 = vmatprep.subr.mxu0 0.0
        %327 = vmatpush2.msra.mxu0 0.0
        %328 = vmatprep.subr.mxu0 0.0
        %329 = vmatpush2.msra.mxu0 0.0
        %330 = vmatprep.subr.mxu0 0.0
        %331 = vmatpush2.msra.mxu0 0.0
        %332 = vmatprep.subr.mxu0 0.0
        %333 = vmatpush2.msra.mxu0 0.0
        %334 = vmatprep.subr.mxu0 0.0
        %335 = vmatpush2.msra.mxu0 0.0
        %336 = vmatprep.subr.mxu0 0.0
        %337 = vmatpush2.msra.mxu0 0.0
        %338 = vmatprep.subr.mxu0 0.0
        %339 = vmatpush2.msra.mxu0 0.0
        %340 = vmatprep.mubr.f32.mxu0 0.0
        %341 = vmatmul.mubr.f32.gmra.mxu0 %v268
        %v342 = vpop.f32.mrf.mxu0
        %v343 = vadd.f32 %v259, %v342
        %v344 = vpop.f32.mrf.mxu0
        %345 = vmatprep.mubr.f32.mxu0 0.0
        %346 = vmatmul.mubr.f32.gmra.mxu0 %v271
        %v347 = vpop.f32.mrf.mxu0
        %v348 = vadd.f32 %v264, %v347
        %v349 = vpop.f32.mrf.mxu0
        %350 = vdwg.mxu0
        %v351 = vmax.f32 %v343, 0.0
        %v352 = vmax.f32 %v348, 0.0
        %v353 = vadd.f32 %v351, %v352
        %354 = vst [vmem:[%s210] sm:$0xff] %v353
        %s355 = sand.u32 %s131, 1
        %s356 = scalar_lea.sflag [#allocation3], %s355
        %s357 = sand.u32 %s131, 1
        %s358 = smul.addr %s357, 8
        %s359 = scalar_lea.vmem [#allocation2], %s358
        // Predicated region
        $region37: #{tpu_custom_call.1} parent=35 // pred_check
          %p360 = pneg %p141
        $region38: #{tpu_custom_call.1} parent=35 // pred_check_branch
          %362 = sbr.rel (%p360) target = $region40
        $region39: #{tpu_custom_call.1} parent=35 // pred_region
          %s364 = ssub.s32 128, 128
          %365 = vsyncadd %s356, %s364
          %s366 = sadd.s32 %s23, %s22
          %s367 = smul.addr %s366, 128
          %s368 = scalar_lea.hbm %s4, %s367
          %s370 = sshll.u32 %s359, 4
          %s371 = int_to_ptr.vmem [resolvable:$true] %s370
          %373 = dma.vmem_to_hbm [thread:$0]  %s371, 128, %s368, %s356
        $region40: #{tpu_custom_call.1} parent=35 // pred_fallthru
          _
      $region36: #{tpu_custom_call.1} parent=5 // pred_fallthru
        _
      %p374 = scmp.le.s32.totalorder 2, %s13
      // Predicated region
      $region41: #{tpu_custom_call.1} parent=5 // pred_check
        %p375 = pneg %p374
      $region42: #{tpu_custom_call.1} parent=5 // pred_check_branch
        %377 = sbr.rel (%p375) target = $region44
      $region43: #{tpu_custom_call.1} parent=5 // pred_region
        %s378 = ssub.s32 %s13, 2
        // Predicated region
        $region45: #{tpu_custom_call.1} parent=43 // pred_check
          %p379 = pneg %p147
        $region46: #{tpu_custom_call.1} parent=43 // pred_check_branch
          %381 = sbr.rel (%p379) target = $region48
        $region47: #{tpu_custom_call.1} parent=43 // pred_region
          %s382 = sand.u32 %s132, 1
          %s383 = scalar_lea.sflag [#allocation3], %s382
          %s384 = sand.u32 %s132, 1
          %s385 = smul.addr %s384, 8
          %s386 = scalar_lea.vmem [#allocation2], %s385
          %387 = dma.done %s383, 128
        $region48: #{tpu_custom_call.1} parent=43 // pred_fallthru
          _
      $region44: #{tpu_custom_call.1} parent=5 // pred_fallthru
        _
    $region6: #{tpu_custom_call.1} parent=1 // loop_footer
      %s17 = sadd.s32 1, %s13
    $region7: #{tpu_custom_call.1} parent=1 // loop_footer_branch
      %12 = sbr.rel target = $region3
    $region8: #{tpu_custom_call.1} parent=1 // loop_exit
      _
    %388 = vsyncpa [#allocation3], 1
    %s389 = scalar_lea.sflag [#allocation3], 1
    %390 = vsyncpa %s389, 1

</llo_original>
